<compile_context>
chip_gen: v5e
topology: v5e:2x2
jax: 0.10.0
libtpu: 0.0.40
codegen_flags: <defaults>
</compile_context>

<pallas_src>
import functools

import jax
import jax.numpy as jnp
from jax.experimental import pallas as pl
from jax.experimental.pallas import tpu as pltpu


def _round_up(n, m):
    return ((n + m - 1) // m) * m


def _csl_kernel(t_ref, x_ref, w_ref, b_ref, wg_ref, bg_ref, wb_ref, o_ref):
    # t_ref: (TB, 1)   x_ref: (TB, dim_in)
    # w_ref: (dim_in, dim_out)   b_ref / wg_ref / bg_ref / wb_ref: (1, dim_out)
    # o_ref: (TB, dim_out)
    t = t_ref[...].astype(jnp.float32)                         # (TB, 1)

    # Main linear on the MXU: bf16 operands (one MXU pass), f32 accumulation.
    y = jnp.dot(
        x_ref[...].astype(jnp.bfloat16),
        w_ref[...].astype(jnp.bfloat16),
        preferred_element_type=jnp.float32,
    ) + b_ref[...].astype(jnp.float32)                          # (TB, dim_out)

    # Linear(1, dim_out) == outer product with t (VPU); sigmoid uses the EUP.
    gate = jax.nn.sigmoid(t * wg_ref[...] + bg_ref[...])        # (TB, dim_out)
    hyper_bias = t * wb_ref[...]                                 # (TB, dim_out)

    o_ref[...] = (y * gate + hyper_bias).astype(o_ref.dtype)


def _choose_row_tile(B, dim_in, dim_out, x_bytes, t_bytes, o_bytes, w_bytes,
                     cap, vmem_budget):
    # Resident weights/biases are single-buffered (pl.Buffered(1)).
    resident = dim_in * dim_out * w_bytes + 4 * dim_out * 4
    avail = max(vmem_budget - resident, 2 * 1024 * 1024)
    # Per-row bytes of the double-buffered streaming tiles (t, x, out).
    per_row = 2 * (t_bytes + dim_in * x_bytes + dim_out * o_bytes)
    tb = max(8, (avail // per_row) // 8 * 8)
    if tb >= 256:
        tb = (tb // 256) * 256          # keep the v6e/v7x 256x256 MXU full
    tb = min(tb, cap, max(8, (B // 8) * 8))
    # v7x megacore: make sure there are >= 2 grid blocks when B allows it,
    # otherwise one of the two TensorCores idles.
    if B >= 16 and pl.cdiv(B, tb) < 2:
        tb = max(8, _round_up(pl.cdiv(B, 2), 8))
    return tb


@functools.partial(jax.jit, static_argnames=("block_rows", "out_dtype"))
def concat_squash_linear(t, x, w_layer, b_layer, w_gate, b_gate, w_hbias,
                         *, block_rows=1024, out_dtype=None):
    """ConcatSquashLinear forward.

    t:       (B,)                 per-row noise level / timestep
    x:       (B, dim_in)
    w_layer: (dim_in, dim_out)    == torch _layer.weight.T (transpose once at load time)
    b_layer: (dim_out,)           == torch _layer.bias
    w_gate:  (dim_out,)           == torch _hyper_gate.weight[:, 0]
    b_gate:  (dim_out,)           == torch _hyper_gate.bias
    w_hbias: (dim_out,)           == torch _hyper_bias.weight[:, 0]
    returns  (B, dim_out)
    """
    B, dim_in = x.shape
    dim_out = w_layer.shape[1]
    out_dt = jnp.dtype(x.dtype if out_dtype is None else out_dtype)

    vmem_budget = 36 * 1024 * 1024   # working-set target; fits v7x's 64 MiB VMEM
    tb = _choose_row_tile(
        B, dim_in, dim_out,
        x_bytes=x.dtype.itemsize, t_bytes=t.dtype.itemsize,
        o_bytes=out_dt.itemsize, w_bytes=w_layer.dtype.itemsize,
        cap=block_rows, vmem_budget=vmem_budget)
    grid = (pl.cdiv(B, tb),)

    # Cheap (bitcast-like) reshapes only — no wrapper-side casts / pads / slices.
    t2d = t.reshape(B, 1)
    b2d = b_layer.reshape(1, dim_out)
    wg2d = w_gate.reshape(1, dim_out)
    bg2d = b_gate.reshape(1, dim_out)
    wb2d = w_hbias.reshape(1, dim_out)

    def _resident(shape):
        # Constant-index blocks: DMA'd once, single-buffered in VMEM.
        return pl.BlockSpec(shape, lambda i: (0, 0), pipeline_mode=pl.Buffered(1))

    # NOTE: for very large dim_in*dim_out (W >~ 16 MiB) add a second "parallel"
    # grid axis tiling dim_out so W also streams through VMEM; not needed for
    # ncsnpp-sized layers.
    return pl.pallas_call(
        _csl_kernel,
        out_shape=jax.ShapeDtypeStruct((B, dim_out), out_dt),
        grid_spec=pltpu.PrefetchScalarGridSpec(
            num_scalar_prefetch=0,
            grid=grid,
            in_specs=[
                pl.BlockSpec((tb, 1), lambda i: (i, 0)),       # t   (row-tiled)
                pl.BlockSpec((tb, dim_in), lambda i: (i, 0)),  # x   (row-tiled)
                _resident((dim_in, dim_out)),                  # W   (resident)
                _resident((1, dim_out)),                       # b   (resident)
                _resident((1, dim_out)),                       # Wg  (resident)
                _resident((1, dim_out)),                       # bg  (resident)
                _resident((1, dim_out)),                       # Wb  (resident)
            ],
            out_specs=pl.BlockSpec((tb, dim_out), lambda i: (i, 0)),
        ),
        compiler_params=pltpu.CompilerParams(
            dimension_semantics=("parallel",),
            vmem_limit_bytes=48 * 1024 * 1024,
        ),
    )(t2d, x, w_layer, b2d, wg2d, bg2d, wb2d)


def _reference(t, x, w_layer, b_layer, w_gate, b_gate, w_hbias):
    # Plain-JAX reference matching the PyTorch forward in full f32.
    layer = jnp.dot(x, w_layer, precision=jax.lax.Precision.HIGHEST) + b_layer[None, :]
    gate = jax.nn.sigmoid(t[:, None] * w_gate[None, :] + b_gate[None, :])
    hyper_bias = t[:, None] * w_hbias[None, :]
    return layer * gate + hyper_bias


if __name__ == "__main__":
    key = jax.random.PRNGKey(0)
    ks = jax.random.split(key, 7)

    dim_in, dim_out = 32, 128   # dim_out multiple of 128 -> lane-dense stores

    w_layer = jax.random.normal(ks[2], (dim_in, dim_out), dtype=jnp.float32) / jnp.sqrt(dim_in)
    b_layer = jax.random.normal(ks[3], (dim_out,), dtype=jnp.float32) * 0.01
    w_gate = jax.random.normal(ks[4], (dim_out,), dtype=jnp.float32)
    b_gate = jax.random.normal(ks[5], (dim_out,), dtype=jnp.float32) * 0.01
    w_hbias = jax.random.normal(ks[6], (dim_out,), dtype=jnp.float32)

    # Two batch sizes: one tile-aligned, one exercising the masked partial block.
    for batch in (8, 13):
        xk, tk = jax.random.split(jax.random.fold_in(ks[0], batch))
        x = jax.random.normal(xk, (batch, dim_in), dtype=jnp.float32)
        t = jax.random.uniform(tk, (batch,), dtype=jnp.float32)

        out = concat_squash_linear(t, x, w_layer, b_layer, w_gate, b_gate, w_hbias)
        out = jax.block_until_ready(out)

        ref = _reference(t, x, w_layer, b_layer, w_gate, b_gate, w_hbias)

        assert out.shape == (batch, dim_out), out.shape
        # bf16 MXU operands with f32 accumulation => small deviation vs f32 reference.
        assert jnp.allclose(out, ref, atol=2e-2, rtol=2e-2), "mismatch vs reference"

    print("KERNEL_OK")
</pallas_src>

<mosaic_0001>
module attributes {stable_mosaic.version = 11 : i64} {
  func.func @_csl_kernel(%arg0: i32, %arg1: memref<8x1xf32, #tpu.memory_space<vmem>>, %arg2: memref<8x32xf32, #tpu.memory_space<vmem>>, %arg3: memref<32x128xf32, #tpu.memory_space<vmem>>, %arg4: memref<1x128xf32, #tpu.memory_space<vmem>>, %arg5: memref<1x128xf32, #tpu.memory_space<vmem>>, %arg6: memref<1x128xf32, #tpu.memory_space<vmem>>, %arg7: memref<1x128xf32, #tpu.memory_space<vmem>>, %arg8: memref<8x128xf32, #tpu.memory_space<vmem>>) attributes {dimension_semantics = [#tpu.dimension_semantics<parallel>], iteration_bounds = array<i64: 1>, scalar_prefetch = 0 : i64, scratch_operands = 0 : i64, tpu.core_type = #tpu.core_type<tc>, window_params = [{transform_indices = @transform_0, window_bounds = array<i64: 8, 1>}, {transform_indices = @transform_1, window_bounds = array<i64: 8, 32>}, {pipeline_mode = #tpu.pipeline_mode<synchronous>, transform_indices = @transform_2, window_bounds = array<i64: 32, 128>}, {pipeline_mode = #tpu.pipeline_mode<synchronous>, transform_indices = @transform_3, window_bounds = array<i64: 1, 128>}, {pipeline_mode = #tpu.pipeline_mode<synchronous>, transform_indices = @transform_4, window_bounds = array<i64: 1, 128>}, {pipeline_mode = #tpu.pipeline_mode<synchronous>, transform_indices = @transform_5, window_bounds = array<i64: 1, 128>}, {pipeline_mode = #tpu.pipeline_mode<synchronous>, transform_indices = @transform_6, window_bounds = array<i64: 1, 128>}, {transform_indices = @transform_7, window_bounds = array<i64: 8, 128>}]} {
    %c0 = arith.constant 0 : index
    %c0_0 = arith.constant 0 : index
    %0 = vector.load %arg1[%c0, %c0_0] : memref<8x1xf32, #tpu.memory_space<vmem>>, vector<8x1xf32>
    %c0_1 = arith.constant 0 : index
    %c0_2 = arith.constant 0 : index
    %1 = vector.load %arg2[%c0_1, %c0_2] : memref<8x32xf32, #tpu.memory_space<vmem>>, vector<8x32xf32>
    %2 = arith.truncf %1 : vector<8x32xf32> to vector<8x32xbf16>
    %c0_3 = arith.constant 0 : index
    %c0_4 = arith.constant 0 : index
    %3 = vector.load %arg3[%c0_3, %c0_4] : memref<32x128xf32, #tpu.memory_space<vmem>>, vector<32x128xf32>
    %4 = arith.truncf %3 : vector<32x128xf32> to vector<32x128xbf16>
    %cst = arith.constant dense<0.000000e+00> : vector<8x128xf32>
    %5 = tpu.matmul %2, %4, %cst {dimension_numbers = #tpu.dot_dimension_numbers<[1], [0], [0], [1], [0, 0, 1, 1], [], []>} : vector<8x32xbf16>, vector<32x128xbf16>, vector<8x128xf32> -> vector<8x128xf32>
    %c0_5 = arith.constant 0 : index
    %c0_6 = arith.constant 0 : index
    %6 = vector.load %arg4[%c0_5, %c0_6] : memref<1x128xf32, #tpu.memory_space<vmem>>, vector<1x128xf32>
    %7 = vector.broadcast %6 : vector<1x128xf32> to vector<8x128xf32>
    %8 = arith.addf %5, %7 : vector<8x128xf32>
    %c0_7 = arith.constant 0 : index
    %c0_8 = arith.constant 0 : index
    %9 = vector.load %arg5[%c0_7, %c0_8] : memref<1x128xf32, #tpu.memory_space<vmem>>, vector<1x128xf32>
    %10 = vector.broadcast %0 : vector<8x1xf32> to vector<8x128xf32>
    %11 = vector.broadcast %9 : vector<1x128xf32> to vector<8x128xf32>
    %12 = arith.mulf %10, %11 : vector<8x128xf32>
    %c0_9 = arith.constant 0 : index
    %c0_10 = arith.constant 0 : index
    %13 = vector.load %arg6[%c0_9, %c0_10] : memref<1x128xf32, #tpu.memory_space<vmem>>, vector<1x128xf32>
    %14 = vector.broadcast %13 : vector<1x128xf32> to vector<8x128xf32>
    %15 = arith.addf %12, %14 : vector<8x128xf32>
    %16 = arith.negf %15 : vector<8x128xf32>
    %17 = math.exp %16 : vector<8x128xf32>
    %cst_11 = arith.constant 1.000000e+00 : f32
    %18 = vector.broadcast %cst_11 : f32 to vector<8x128xf32>
    %19 = arith.addf %18, %17 : vector<8x128xf32>
    %20 = arith.divf %18, %19 : vector<8x128xf32>
    %c0_12 = arith.constant 0 : index
    %c0_13 = arith.constant 0 : index
    %21 = vector.load %arg7[%c0_12, %c0_13] : memref<1x128xf32, #tpu.memory_space<vmem>>, vector<1x128xf32>
    %22 = vector.broadcast %0 : vector<8x1xf32> to vector<8x128xf32>
    %23 = vector.broadcast %21 : vector<1x128xf32> to vector<8x128xf32>
    %24 = arith.mulf %22, %23 : vector<8x128xf32>
    %25 = arith.mulf %8, %20 : vector<8x128xf32>
    %26 = arith.addf %25, %24 : vector<8x128xf32>
    %c0_14 = arith.constant 0 : index
    %c0_15 = arith.constant 0 : index
    %27 = vector.load %arg8[%c0_14, %c0_15] : memref<8x128xf32, #tpu.memory_space<vmem>>, vector<8x128xf32>
    tpu.vector_store %arg8[%c0_14, %c0_15], %26 {strides = array<i32>} : memref<8x128xf32, #tpu.memory_space<vmem>>, vector<8x128xf32>,
    return
  }
  func.func @transform_0(%arg0: i32) -> (i32, i32) {
    %c0_i32 = arith.constant 0 : i32
    %c0_i32_0 = arith.constant 0 : i32
    return %arg0, %c0_i32 : i32, i32
  }
  func.func @transform_1(%arg0: i32) -> (i32, i32) {
    %c0_i32 = arith.constant 0 : i32
    %c0_i32_0 = arith.constant 0 : i32
    return %arg0, %c0_i32 : i32, i32
  }
  func.func @transform_2(%arg0: i32) -> (i32, i32) {
    %c0_i32 = arith.constant 0 : i32
    %c0_i32_0 = arith.constant 0 : i32
    %c0_i32_1 = arith.constant 0 : i32
    return %c0_i32, %c0_i32_0 : i32, i32
  }
  func.func @transform_3(%arg0: i32) -> (i32, i32) {
    %c0_i32 = arith.constant 0 : i32
    %c0_i32_0 = arith.constant 0 : i32
    %c0_i32_1 = arith.constant 0 : i32
    return %c0_i32, %c0_i32_0 : i32, i32
  }
  func.func @transform_4(%arg0: i32) -> (i32, i32) {
    %c0_i32 = arith.constant 0 : i32
    %c0_i32_0 = arith.constant 0 : i32
    %c0_i32_1 = arith.constant 0 : i32
    return %c0_i32, %c0_i32_0 : i32, i32
  }
  func.func @transform_5(%arg0: i32) -> (i32, i32) {
    %c0_i32 = arith.constant 0 : i32
    %c0_i32_0 = arith.constant 0 : i32
    %c0_i32_1 = arith.constant 0 : i32
    return %c0_i32, %c0_i32_0 : i32, i32
  }
  func.func @transform_6(%arg0: i32) -> (i32, i32) {
    %c0_i32 = arith.constant 0 : i32
    %c0_i32_0 = arith.constant 0 : i32
    %c0_i32_1 = arith.constant 0 : i32
    return %c0_i32, %c0_i32_0 : i32, i32
  }
  func.func @transform_7(%arg0: i32) -> (i32, i32) {
    %c0_i32 = arith.constant 0 : i32
    %c0_i32_0 = arith.constant 0 : i32
    return %arg0, %c0_i32 : i32, i32
  }
}

</mosaic_0001>

<llo_original>
// kernel: concat_squash_linear.1
$region0: #{concat_squash_linear.1}
  #allocation0 [shape = 'u32[]', space=smem, size = 0x4, offset = 0x4, fixed_abs, tag = 'smem constant byte address 0x4 - core index']
  #allocation1 [shape = 'u32[72,128]{1,0:T(1,128)}', space=vmem, size = 0x9000, scoped, tag = 'internal scratch']
  %s0 = inlined_call_operand.vmem [shape: f32[8,1], index: 0, kind: input, shape index: {}]
  %s1 = inlined_call_operand.vmem [shape: f32[8,32], index: 1, kind: input, shape index: {}]
  %s2 = inlined_call_operand.hbm [shape: f32[32,128], index: 2, kind: input, shape index: {}]
  %s3 = inlined_call_operand.vmem [shape: f32[1,128], index: 3, kind: input, shape index: {}]
  %s4 = inlined_call_operand.vmem [shape: f32[1,128], index: 4, kind: input, shape index: {}]
  %s5 = inlined_call_operand.vmem [shape: f32[1,128], index: 5, kind: input, shape index: {}]
  %s6 = inlined_call_operand.vmem [shape: f32[1,128], index: 6, kind: input, shape index: {}]
  %s7 = inlined_call_operand.hbm [shape: f32[8,128], index: 7, kind: output, shape index: {}]
  %s8 = sld [smem:[#allocation0]]
  $region42: #{concat_squash_linear.1} parent=0
    _
  %s10 = ssub.s32 1, %s8
  %s11 = scalar_select 0, %s10, %s8
  $region1: #{concat_squash_linear.1} parent=0
    #allocation2 [shape = 'u8[16384]{0}', space=vmem, size = 0x4000, scoped, tag = 'input window, operand 2, single buffered']
    #allocation3 [shape = 's32[1]{0}', space=sflag, size = 0x4, scoped, tag = 'scoped memory for concat_squash_linear.1']
    #allocation4 [shape = 's32[1]{0}', space=sflag, size = 0x4, scoped, tag = 'scoped memory for concat_squash_linear.1']
    #allocation5 [shape = 'u8[4096]{0}', space=vmem, size = 0x1000, scoped, tag = 'output window, operand 0, single buffered']
    %12 = vsyncpa [#allocation3], 0
    %13 = vsyncpa [#allocation4], 0
    // Predicated region
    $region2: #{concat_squash_linear.1} parent=1 // pred_check
      _
    $region3: #{concat_squash_linear.1} parent=1 // pred_check_branch
      %15 = sbr.rel (0) target = $region5
    $region4: #{concat_squash_linear.1} parent=1 // pred_region
      _
    $region5: #{concat_squash_linear.1} parent=1 // pred_fallthru
      _
    // Predicated region
    $region6: #{concat_squash_linear.1} parent=1 // pred_check
      _
    $region7: #{concat_squash_linear.1} parent=1 // pred_check_branch
      %17 = sbr.rel (0) target = $region9
    $region8: #{concat_squash_linear.1} parent=1 // pred_region
      _
    $region9: #{concat_squash_linear.1} parent=1 // pred_fallthru
      _
    // Predicated region
    $region10: #{concat_squash_linear.1} parent=1 // pred_check
      _
    $region11: #{concat_squash_linear.1} parent=1 // pred_check_branch
      %19 = sbr.rel (0) target = $region13
    $region12: #{concat_squash_linear.1} parent=1 // pred_region
      %21 = vsyncadd [#allocation3], 0
      %s22 = sshll.u32 %s2, 4
      %s23 = int_to_ptr.hbm [resolvable:$true] %s22
      %s24 = sshll.u32 [#allocation2], 4
      %s25 = int_to_ptr.vmem [resolvable:$true] %s24
      %30 = dma.hbm_to_vmem [thread:$0]  %s23, 512, %s25, [#allocation3], 128, 128, 8
    $region13: #{concat_squash_linear.1} parent=1 // pred_fallthru
      _
    // Predicated region
    $region14: #{concat_squash_linear.1} parent=1 // pred_check
      _
    $region15: #{concat_squash_linear.1} parent=1 // pred_check_branch
      %32 = sbr.rel (0) target = $region17
    $region16: #{concat_squash_linear.1} parent=1 // pred_region
      _
    $region17: #{concat_squash_linear.1} parent=1 // pred_fallthru
      _
    // Predicated region
    $region18: #{concat_squash_linear.1} parent=1 // pred_check
      _
    $region19: #{concat_squash_linear.1} parent=1 // pred_check_branch
      %34 = sbr.rel (0) target = $region21
    $region20: #{concat_squash_linear.1} parent=1 // pred_region
      _
    $region21: #{concat_squash_linear.1} parent=1 // pred_fallthru
      _
    // Predicated region
    $region22: #{concat_squash_linear.1} parent=1 // pred_check
      _
    $region23: #{concat_squash_linear.1} parent=1 // pred_check_branch
      %36 = sbr.rel (0) target = $region25
    $region24: #{concat_squash_linear.1} parent=1 // pred_region
      _
    $region25: #{concat_squash_linear.1} parent=1 // pred_fallthru
      _
    // Predicated region
    $region26: #{concat_squash_linear.1} parent=1 // pred_check
      _
    $region27: #{concat_squash_linear.1} parent=1 // pred_check_branch
      %38 = sbr.rel (0) target = $region29
    $region28: #{concat_squash_linear.1} parent=1 // pred_region
      _
    $region29: #{concat_squash_linear.1} parent=1 // pred_fallthru
      _
    // Predicated region
    $region30: #{concat_squash_linear.1} parent=1 // pred_check
      _
    $region31: #{concat_squash_linear.1} parent=1 // pred_check_branch
      %40 = sbr.rel (0) target = $region33
    $region32: #{concat_squash_linear.1} parent=1 // pred_region
      %42 = dma.done [#allocation3], 512
    $region33: #{concat_squash_linear.1} parent=1 // pred_fallthru
      _
    %v44 = vld [vmem:[%s0] sm:$0xff]
    %v45 = vld [vmem:[%s1] sm:$0xff]
    %v46 = vpack.c.bf16 %v45, %v45
    %v47 = vld [vmem:[#allocation2] sm:$0xff]
    %v48 = vld [vmem:[#allocation2 + $0x8] sm:$0xff]
    %v49 = vld [vmem:[#allocation2 + $0x10] sm:$0xff]
    %v50 = vld [vmem:[#allocation2 + $0x18] sm:$0xff]
    %v51 = vpack.c.bf16 %v48, %v47
    %v52 = vpack.c.bf16 %v50, %v49
    %v53 = vld [vmem:[%s3] sm:$0x1]
    %v55 = vperm.slane %v53, 0
    %vm57 = vcmask 261120
    %v59 = vsel %vm57, %v46, 0
    %61 = vmatpush.bf16.msra.mxu0 0
    %62 = vmatpush.bf16.msra.mxu0 0
    %63 = vmatpush.bf16.msra.mxu0 0
    %64 = vmatpush.bf16.msra.mxu0 0
    %65 = vmatpush.bf16.msra.mxu0 0
    %66 = vmatpush.bf16.msra.mxu0 0
    %67 = vmatpush.bf16.msra.mxu0 %v52
    %68 = vmatpush.bf16.msra.mxu0 %v51
    %69 = vmatmul.bf16.gmra.mxu0 %v59
    %v70 = vpop.f32.mrf.mxu0
    %v71 = vadd.f32 %v55, %v70
    %v72 = vpop.f32.mrf.mxu0
    %73 = vdwg.mxu0
    %v74 = vld [vmem:[%s4] sm:$0x1]
    %76 = vset.pattern.permute.xlu0 0
    %77 = vperm.xlu0 %76, %v44
    %v78 = vpop.permute.xlu0 %77
    %v81 = vperm.slane %v74, 0
    %v83 = vmul.f32 %v78, %v81
    %v84 = vld [vmem:[%s5] sm:$0x1]
    %v86 = vperm.slane %v84, 0
    %v88 = vadd.f32 %v83, %v86
    %v89 = vxor.u32 %v88, 2147483648
    %v90 = vmul.f32 %v89, 1.442695
    %v91 = vpow.pop %v90
    %v92 = vadd.f32 %v91, 1.0
    %v93 = vrcp.pop %v92
    %v94 = vmul.f32 %v92, %v93
    %v95 = vsub.f32 1.0, %v94
    %v96 = vmul.f32 %v93, %v95
    %v97 = vadd.f32 %v93, %v96
    %vm98 = vweird.f32 %v92
    %vm99 = vweird.f32 %v93
    %vm100 = vmor %vm98, %vm99
    %v101 = vsel %vm100, %v93, %v97
    %v102 = vand.u32 2147483647, %v92
    %vm103 = vcmp.eq.f32.partialorder %v102, 8.507059e+37
    %v104 = vand.u32 %v92, 2147483648
    %v105 = vor.u32 1.1754944e-38, %v104
    %v106 = vsel %vm103, %v105, %v101
    %v107 = vmul.f32 1.0, %v106
    %v108 = vld [vmem:[%s6] sm:$0x1]
    %v110 = vperm.slane %v108, 0
    %v112 = vmul.f32 %v78, %v110
    %v113 = vmul.f32 %v71, %v107
    %v114 = vadd.f32 %v113, %v112
    %115 = vst [vmem:[#allocation5] sm:$0xff] %v114
    // Predicated region
    $region34: #{concat_squash_linear.1} parent=1 // pred_check
      _
    $region35: #{concat_squash_linear.1} parent=1 // pred_check_branch
      %117 = sbr.rel (0) target = $region37
    $region36: #{concat_squash_linear.1} parent=1 // pred_region
      %119 = vsyncadd [#allocation4], 0
      %s121 = sshll.u32 [#allocation5], 4
      %s122 = int_to_ptr.vmem [resolvable:$true] %s121
      %s123 = sshll.u32 %s7, 4
      %s124 = int_to_ptr.hbm [resolvable:$true] %s123
      %126 = dma.vmem_to_hbm [thread:$0]  %s122, 128, %s124, [#allocation4]
    $region37: #{concat_squash_linear.1} parent=1 // pred_fallthru
      _
    // Predicated region
    $region38: #{concat_squash_linear.1} parent=1 // pred_check
      _
    $region39: #{concat_squash_linear.1} parent=1 // pred_check_branch
      %128 = sbr.rel (0) target = $region41
    $region40: #{concat_squash_linear.1} parent=1 // pred_region
      %130 = dma.done [#allocation4], 128
    $region41: #{concat_squash_linear.1} parent=1 // pred_fallthru
      _
    %131 = vsyncpa [#allocation3], 1
    %132 = vsyncpa [#allocation4], 1

</llo_original>
